<compile_context>
chip_gen: v6e
topology: v6e:2x2x1
jax: 0.10.0
libtpu: 0.0.40
codegen_flags: <defaults>
</compile_context>

<pallas_src>
import math

import jax
import jax.numpy as jnp
from jax.experimental import pallas as pl
from jax.experimental.pallas import tpu as pltpu

KERNELS = (15, 25, 35)
K_MAX = max(KERNELS)          # 35
PAD_LEFT = K_MAX // 2         # 17 (shared left halo for all branches)
BN_EPS = 1e-5
SUBLANE = 8                   # f32 sublane group
LANE = 128
MATMUL_DTYPE = jnp.bfloat16   # MXU inputs; accumulation stays f32


def _round_up(v, m):
    return (v + m - 1) // m * m


def _pick_nb(n, cap=8):
    """Largest divisor of n that is <= cap (batch items per grid step)."""
    for nb in range(min(n, cap), 0, -1):
        if n % nb == 0:
            return nb
    return 1


def _make_conv_stats_kernel(NB, C_in_pad, C_out3, L, taps_pad, taps_per_chunk):
    n_chunks = taps_pad // taps_per_chunk

    def kernel(x_ref, w_ref, y_ref, psum_ref, psq_ref):
        # x_ref: (NB, C_in_pad, Lp) f32   w_ref: (C_out3, taps_pad*C_in_pad) bf16
        # y_ref: (NB, C_out3, L) f32      psum/psq: (1, C_out3, 1) f32
        s_acc = jnp.zeros((C_out3, 1), jnp.float32)
        q_acc = jnp.zeros((C_out3, 1), jnp.float32)
        for b in range(NB):                                    # static unroll
            xb = x_ref[b]                                      # (C_in_pad, Lp)
            acc = jnp.zeros((C_out3, L), jnp.float32)
            for c in range(n_chunks):                          # static unroll
                t0 = c * taps_per_chunk
                # im2col chunk: sublane-aligned (C_in_pad-row) pieces shifted
                # along the lane axis; K per matmul = taps_per_chunk*C_in_pad.
                patch = jnp.concatenate(
                    [xb[:, t0 + t:t0 + t + L] for t in range(taps_per_chunk)],
                    axis=0).astype(MATMUL_DTYPE)               # (K, L)
                wc = w_ref[:, t0 * C_in_pad:(t0 + taps_per_chunk) * C_in_pad]
                acc = acc + jnp.dot(wc, patch,
                                    preferred_element_type=jnp.float32)
            y_ref[b] = acc
            s_acc = s_acc + jnp.sum(acc, axis=1, keepdims=True)
            q_acc = q_acc + jnp.sum(acc * acc, axis=1, keepdims=True)
        psum_ref[0] = s_acc
        psq_ref[0] = q_acc

    return kernel


def _make_norm_kernel(C_out, inv_branches):
    def kernel(y_ref, scale_ref, shift_ref, o_ref):
        # y_ref: (NB, C_out3, L); scale/shift: (C_out3, 1); o_ref: (NB, C_out, L)
        z = y_ref[...] * scale_ref[...][None] + shift_ref[...][None]
        # ELU(alpha=1)
        z = jnp.where(z > 0, z, jnp.exp(jnp.minimum(z, 0.0)) - 1.0)
        out = z[:, 0:C_out] + z[:, C_out:2 * C_out] + z[:, 2 * C_out:3 * C_out]
        o_ref[...] = (out * inv_branches).astype(o_ref.dtype)

    return kernel


def multi_scale_conv1d(x_ncl, weights, gammas, betas):
    """x_ncl: (N, C_in, L). weights[i]: (C_out, C_in, k_i). Returns (N, C_out, L)."""
    N, C_in, L = x_ncl.shape
    C_out = weights[0].shape[0]
    n_br = len(KERNELS)
    C_out3 = n_br * C_out

    C_in_pad = _round_up(C_in, SUBLANE)
    taps_per_chunk = max(1, LANE // C_in_pad)          # K per matmul ~= 128
    taps_pad = _round_up(K_MAX, taps_per_chunk)        # e.g. 48 for C_in_pad=8
    G = taps_pad * C_in_pad
    Lp = _round_up(L + taps_pad - 1, LANE)             # lane-aligned padded length
    NB = _pick_nb(N)
    T = N // NB

    x = x_ncl.astype(jnp.float32)
    # One shared zero-padded copy: channels padded to a sublane group, length
    # left-padded by K_MAX//2, right-padded so every tap shift stays in bounds.
    xpad = jnp.pad(x, ((0, 0), (0, C_in_pad - C_in),
                       (PAD_LEFT, Lp - L - PAD_LEFT)))

    # Fused weight matrix: branches stacked along output channels, each
    # branch's taps embedded in the shared taps_pad window at PAD_LEFT - k//2.
    wf = jnp.zeros((C_out3, taps_pad, C_in_pad), jnp.float32)
    for i, (w, k) in enumerate(zip(weights, KERNELS)):
        off = PAD_LEFT - k // 2
        wt = jnp.transpose(w.astype(jnp.float32), (0, 2, 1))   # (C_out, k, C_in)
        wf = wf.at[i * C_out:(i + 1) * C_out, off:off + k, :C_in].set(wt)
    wf = wf.reshape(C_out3, G).astype(MATMUL_DTYPE)

    cparams = pltpu.CompilerParams(
        dimension_semantics=("parallel",),
        vmem_limit_bytes=48 * 1024 * 1024)   # safe on v7x (64 MiB) and v5e/v6e

    # ---- kernel 1: fused conv + per-tile partial BN statistics --------------
    conv_kernel = _make_conv_stats_kernel(NB, C_in_pad, C_out3, L,
                                          taps_pad, taps_per_chunk)
    y, psum, psq = pl.pallas_call(
        conv_kernel,
        out_shape=(jax.ShapeDtypeStruct((N, C_out3, L), jnp.float32),
                   jax.ShapeDtypeStruct((T, C_out3, 1), jnp.float32),
                   jax.ShapeDtypeStruct((T, C_out3, 1), jnp.float32)),
        grid_spec=pltpu.PrefetchScalarGridSpec(
            num_scalar_prefetch=0,
            grid=(T,),
            in_specs=[
                pl.BlockSpec((NB, C_in_pad, Lp), lambda t: (t, 0, 0)),
                pl.BlockSpec((C_out3, G), lambda t: (0, 0)),   # weights resident
            ],
            out_specs=[
                pl.BlockSpec((NB, C_out3, L), lambda t: (t, 0, 0)),
                pl.BlockSpec((1, C_out3, 1), lambda t: (t, 0, 0)),
                pl.BlockSpec((1, C_out3, 1), lambda t: (t, 0, 0)),
            ],
        ),
        compiler_params=cparams,
    )(xpad, wf)

    # ---- tiny global BN reduction + gamma/beta fold (plain JAX) -------------
    inv_count = 1.0 / float(N * L)
    mean = jnp.sum(psum, axis=0) * inv_count                   # (C_out3, 1)
    var = jnp.maximum(jnp.sum(psq, axis=0) * inv_count - mean * mean, 0.0)
    g = jnp.concatenate([a.astype(jnp.float32) for a in gammas]).reshape(C_out3, 1)
    b = jnp.concatenate([a.astype(jnp.float32) for a in betas]).reshape(C_out3, 1)
    scale = g * jax.lax.rsqrt(var + BN_EPS)
    shift = b - mean * scale

    # ---- kernel 2: normalize + ELU + 3-branch average ------------------------
    norm_kernel = _make_norm_kernel(C_out, 1.0 / float(n_br))
    out = pl.pallas_call(
        norm_kernel,
        out_shape=jax.ShapeDtypeStruct((N, C_out, L), jnp.float32),
        grid_spec=pltpu.PrefetchScalarGridSpec(
            num_scalar_prefetch=0,
            grid=(T,),
            in_specs=[
                pl.BlockSpec((NB, C_out3, L), lambda t: (t, 0, 0)),
                pl.BlockSpec((C_out3, 1), lambda t: (0, 0)),
                pl.BlockSpec((C_out3, 1), lambda t: (0, 0)),
            ],
            out_specs=pl.BlockSpec((NB, C_out, L), lambda t: (t, 0, 0)),
        ),
        compiler_params=cparams,
    )(y, scale, shift)
    return out


def reference(x_ncl, weights, gammas, betas):
    """Pure-JAX reference matching the PyTorch forward (training-mode BN)."""
    outs = []
    for w, g, b, k in zip(weights, gammas, betas, KERNELS):
        y = jax.lax.conv_general_dilated(
            x_ncl.astype(jnp.float32), w.astype(jnp.float32),
            window_strides=(1,), padding=[(k // 2, k // 2)],
            dimension_numbers=("NCH", "OIH", "NCH"))
        mean = y.mean(axis=(0, 2), keepdims=True)
        var = ((y - mean) ** 2).mean(axis=(0, 2), keepdims=True)
        yn = (y - mean) / jnp.sqrt(var + BN_EPS)
        yn = yn * g.reshape(1, -1, 1) + b.reshape(1, -1, 1)
        outs.append(jnp.where(yn > 0, yn, jnp.expm1(yn)))
    return sum(outs) / float(len(KERNELS))


if __name__ == "__main__":
    N, C_in, L, C_out = 2, 4, 128, 8     # small; L=128 keeps stores lane-dense

    key = jax.random.PRNGKey(0)
    kx, kw = jax.random.split(key)
    x = jax.random.normal(kx, (N, C_in, L), jnp.float32)

    # Deterministic parameter init (shapes from nn.Conv1d / nn.BatchNorm1d).
    weights, gammas, betas = [], [], []
    for i, k in enumerate(KERNELS):
        bound = 1.0 / math.sqrt(C_in * k)
        wk = jax.random.uniform(jax.random.fold_in(kw, i), (C_out, C_in, k),
                                jnp.float32, minval=-bound, maxval=bound)
        weights.append(wk)
        gammas.append(jnp.ones((C_out,), jnp.float32))   # BatchNorm default weight
        betas.append(jnp.zeros((C_out,), jnp.float32))   # BatchNorm default bias

    out = jax.block_until_ready(multi_scale_conv1d(x, weights, gammas, betas))

    ref = reference(x, weights, gammas, betas)
    assert out.shape == (N, C_out, L)
    # Tolerance loosened for bf16 MXU inputs (f32 accumulation); BN renormalizes
    # so the remaining error is a few 1e-3.
    assert jnp.allclose(out, ref, atol=2e-2, rtol=2e-2), "mismatch vs reference"

    print("KERNEL_OK")
</pallas_src>

<mosaic_0001>
module attributes {stable_mosaic.version = 11 : i64} {
  func.func @kernel(%arg0: i32, %arg1: memref<2x8x256xf32, #tpu.memory_space<vmem>>, %arg2: memref<24x384xbf16, #tpu.memory_space<vmem>>, %arg3: memref<2x24x128xf32, #tpu.memory_space<vmem>>, %arg4: memref<1x24x1xf32, #tpu.memory_space<vmem>>, %arg5: memref<1x24x1xf32, #tpu.memory_space<vmem>>) attributes {dimension_semantics = [#tpu.dimension_semantics<parallel>], iteration_bounds = array<i64: 1>, scalar_prefetch = 0 : i64, scratch_operands = 0 : i64, tpu.core_type = #tpu.core_type<tc>, window_params = [{transform_indices = @transform_0, window_bounds = array<i64: 2, 8, 256>}, {pipeline_mode = #tpu.pipeline_mode<synchronous>, transform_indices = @transform_1, window_bounds = array<i64: 24, 384>}, {transform_indices = @transform_2, window_bounds = array<i64: 2, 24, 128>}, {transform_indices = @transform_3, window_bounds = array<i64: 1, 24, 1>}, {transform_indices = @transform_4, window_bounds = array<i64: 1, 24, 1>}]} {
    %cst = arith.constant 0.000000e+00 : f32
    %0 = vector.broadcast %cst : f32 to vector<24x1xf32>
    %cst_0 = arith.constant 0.000000e+00 : f32
    %1 = vector.broadcast %cst_0 : f32 to vector<24x1xf32>
    %c0 = arith.constant 0 : index
    %c0_1 = arith.constant 0 : index
    %c0_2 = arith.constant 0 : index
    %2 = vector.load %arg1[%c0, %c0_1, %c0_2] : memref<2x8x256xf32, #tpu.memory_space<vmem>>, vector<1x8x256xf32>
    %3 = vector.shape_cast %2 : vector<1x8x256xf32> to vector<8x256xf32>
    %cst_3 = arith.constant 0.000000e+00 : f32
    %4 = vector.broadcast %cst_3 : f32 to vector<24x128xf32>
    %5 = vector.extract_strided_slice %3 {offsets = [0, 0], sizes = [8, 128], strides = [1, 1]} : vector<8x256xf32> to vector<8x128xf32>
    %6 = vector.extract_strided_slice %3 {offsets = [0, 1], sizes = [8, 128], strides = [1, 1]} : vector<8x256xf32> to vector<8x128xf32>
    %7 = vector.extract_strided_slice %3 {offsets = [0, 2], sizes = [8, 128], strides = [1, 1]} : vector<8x256xf32> to vector<8x128xf32>
    %8 = vector.extract_strided_slice %3 {offsets = [0, 3], sizes = [8, 128], strides = [1, 1]} : vector<8x256xf32> to vector<8x128xf32>
    %9 = vector.extract_strided_slice %3 {offsets = [0, 4], sizes = [8, 128], strides = [1, 1]} : vector<8x256xf32> to vector<8x128xf32>
    %10 = vector.extract_strided_slice %3 {offsets = [0, 5], sizes = [8, 128], strides = [1, 1]} : vector<8x256xf32> to vector<8x128xf32>
    %11 = vector.extract_strided_slice %3 {offsets = [0, 6], sizes = [8, 128], strides = [1, 1]} : vector<8x256xf32> to vector<8x128xf32>
    %12 = vector.extract_strided_slice %3 {offsets = [0, 7], sizes = [8, 128], strides = [1, 1]} : vector<8x256xf32> to vector<8x128xf32>
    %13 = vector.extract_strided_slice %3 {offsets = [0, 8], sizes = [8, 128], strides = [1, 1]} : vector<8x256xf32> to vector<8x128xf32>
    %14 = vector.extract_strided_slice %3 {offsets = [0, 9], sizes = [8, 128], strides = [1, 1]} : vector<8x256xf32> to vector<8x128xf32>
    %15 = vector.extract_strided_slice %3 {offsets = [0, 10], sizes = [8, 128], strides = [1, 1]} : vector<8x256xf32> to vector<8x128xf32>
    %16 = vector.extract_strided_slice %3 {offsets = [0, 11], sizes = [8, 128], strides = [1, 1]} : vector<8x256xf32> to vector<8x128xf32>
    %17 = vector.extract_strided_slice %3 {offsets = [0, 12], sizes = [8, 128], strides = [1, 1]} : vector<8x256xf32> to vector<8x128xf32>
    %18 = vector.extract_strided_slice %3 {offsets = [0, 13], sizes = [8, 128], strides = [1, 1]} : vector<8x256xf32> to vector<8x128xf32>
    %19 = vector.extract_strided_slice %3 {offsets = [0, 14], sizes = [8, 128], strides = [1, 1]} : vector<8x256xf32> to vector<8x128xf32>
    %20 = vector.extract_strided_slice %3 {offsets = [0, 15], sizes = [8, 128], strides = [1, 1]} : vector<8x256xf32> to vector<8x128xf32>
    %21 = tpu.concatenate %5, %6, %7, %8, %9, %10, %11, %12, %13, %14, %15, %16, %17, %18, %19, %20 in 0 : vector<8x128xf32>, vector<8x128xf32>, vector<8x128xf32>, vector<8x128xf32>, vector<8x128xf32>, vector<8x128xf32>, vector<8x128xf32>, vector<8x128xf32>, vector<8x128xf32>, vector<8x128xf32>, vector<8x128xf32>, vector<8x128xf32>, vector<8x128xf32>, vector<8x128xf32>, vector<8x128xf32>, vector<8x128xf32> -> vector<128x128xf32>
    %22 = arith.truncf %21 : vector<128x128xf32> to vector<128x128xbf16>
    %c0_4 = arith.constant 0 : index
    %c0_5 = arith.constant 0 : index
    %23 = vector.load %arg2[%c0_4, %c0_5] : memref<24x384xbf16, #tpu.memory_space<vmem>>, vector<24x128xbf16>
    %cst_6 = arith.constant dense<0.000000e+00> : vector<24x128xf32>
    %24 = tpu.matmul %23, %22, %cst_6 {dimension_numbers = #tpu.dot_dimension_numbers<[1], [0], [0], [1], [0, 0, 1, 1], [], []>} : vector<24x128xbf16>, vector<128x128xbf16>, vector<24x128xf32> -> vector<24x128xf32>
    %25 = arith.addf %4, %24 : vector<24x128xf32>
    %26 = vector.extract_strided_slice %3 {offsets = [0, 16], sizes = [8, 128], strides = [1, 1]} : vector<8x256xf32> to vector<8x128xf32>
    %27 = vector.extract_strided_slice %3 {offsets = [0, 17], sizes = [8, 128], strides = [1, 1]} : vector<8x256xf32> to vector<8x128xf32>
    %28 = vector.extract_strided_slice %3 {offsets = [0, 18], sizes = [8, 128], strides = [1, 1]} : vector<8x256xf32> to vector<8x128xf32>
    %29 = vector.extract_strided_slice %3 {offsets = [0, 19], sizes = [8, 128], strides = [1, 1]} : vector<8x256xf32> to vector<8x128xf32>
    %30 = vector.extract_strided_slice %3 {offsets = [0, 20], sizes = [8, 128], strides = [1, 1]} : vector<8x256xf32> to vector<8x128xf32>
    %31 = vector.extract_strided_slice %3 {offsets = [0, 21], sizes = [8, 128], strides = [1, 1]} : vector<8x256xf32> to vector<8x128xf32>
    %32 = vector.extract_strided_slice %3 {offsets = [0, 22], sizes = [8, 128], strides = [1, 1]} : vector<8x256xf32> to vector<8x128xf32>
    %33 = vector.extract_strided_slice %3 {offsets = [0, 23], sizes = [8, 128], strides = [1, 1]} : vector<8x256xf32> to vector<8x128xf32>
    %34 = vector.extract_strided_slice %3 {offsets = [0, 24], sizes = [8, 128], strides = [1, 1]} : vector<8x256xf32> to vector<8x128xf32>
    %35 = vector.extract_strided_slice %3 {offsets = [0, 25], sizes = [8, 128], strides = [1, 1]} : vector<8x256xf32> to vector<8x128xf32>
    %36 = vector.extract_strided_slice %3 {offsets = [0, 26], sizes = [8, 128], strides = [1, 1]} : vector<8x256xf32> to vector<8x128xf32>
    %37 = vector.extract_strided_slice %3 {offsets = [0, 27], sizes = [8, 128], strides = [1, 1]} : vector<8x256xf32> to vector<8x128xf32>
    %38 = vector.extract_strided_slice %3 {offsets = [0, 28], sizes = [8, 128], strides = [1, 1]} : vector<8x256xf32> to vector<8x128xf32>
    %39 = vector.extract_strided_slice %3 {offsets = [0, 29], sizes = [8, 128], strides = [1, 1]} : vector<8x256xf32> to vector<8x128xf32>
    %40 = vector.extract_strided_slice %3 {offsets = [0, 30], sizes = [8, 128], strides = [1, 1]} : vector<8x256xf32> to vector<8x128xf32>
    %41 = vector.extract_strided_slice %3 {offsets = [0, 31], sizes = [8, 128], strides = [1, 1]} : vector<8x256xf32> to vector<8x128xf32>
    %42 = tpu.concatenate %26, %27, %28, %29, %30, %31, %32, %33, %34, %35, %36, %37, %38, %39, %40, %41 in 0 : vector<8x128xf32>, vector<8x128xf32>, vector<8x128xf32>, vector<8x128xf32>, vector<8x128xf32>, vector<8x128xf32>, vector<8x128xf32>, vector<8x128xf32>, vector<8x128xf32>, vector<8x128xf32>, vector<8x128xf32>, vector<8x128xf32>, vector<8x128xf32>, vector<8x128xf32>, vector<8x128xf32>, vector<8x128xf32> -> vector<128x128xf32>
    %43 = arith.truncf %42 : vector<128x128xf32> to vector<128x128xbf16>
    %c0_7 = arith.constant 0 : index
    %c128 = arith.constant 128 : index
    %44 = vector.load %arg2[%c0_7, %c128] : memref<24x384xbf16, #tpu.memory_space<vmem>>, vector<24x128xbf16>
    %cst_8 = arith.constant dense<0.000000e+00> : vector<24x128xf32>
    %45 = tpu.matmul %44, %43, %cst_8 {dimension_numbers = #tpu.dot_dimension_numbers<[1], [0], [0], [1], [0, 0, 1, 1], [], []>} : vector<24x128xbf16>, vector<128x128xbf16>, vector<24x128xf32> -> vector<24x128xf32>
    %46 = arith.addf %25, %45 : vector<24x128xf32>
    %47 = vector.extract_strided_slice %3 {offsets = [0, 32], sizes = [8, 128], strides = [1, 1]} : vector<8x256xf32> to vector<8x128xf32>
    %48 = vector.extract_strided_slice %3 {offsets = [0, 33], sizes = [8, 128], strides = [1, 1]} : vector<8x256xf32> to vector<8x128xf32>
    %49 = vector.extract_strided_slice %3 {offsets = [0, 34], sizes = [8, 128], strides = [1, 1]} : vector<8x256xf32> to vector<8x128xf32>
    %50 = vector.extract_strided_slice %3 {offsets = [0, 35], sizes = [8, 128], strides = [1, 1]} : vector<8x256xf32> to vector<8x128xf32>
    %51 = vector.extract_strided_slice %3 {offsets = [0, 36], sizes = [8, 128], strides = [1, 1]} : vector<8x256xf32> to vector<8x128xf32>
    %52 = vector.extract_strided_slice %3 {offsets = [0, 37], sizes = [8, 128], strides = [1, 1]} : vector<8x256xf32> to vector<8x128xf32>
    %53 = vector.extract_strided_slice %3 {offsets = [0, 38], sizes = [8, 128], strides = [1, 1]} : vector<8x256xf32> to vector<8x128xf32>
    %54 = vector.extract_strided_slice %3 {offsets = [0, 39], sizes = [8, 128], strides = [1, 1]} : vector<8x256xf32> to vector<8x128xf32>
    %55 = vector.extract_strided_slice %3 {offsets = [0, 40], sizes = [8, 128], strides = [1, 1]} : vector<8x256xf32> to vector<8x128xf32>
    %56 = vector.extract_strided_slice %3 {offsets = [0, 41], sizes = [8, 128], strides = [1, 1]} : vector<8x256xf32> to vector<8x128xf32>
    %57 = vector.extract_strided_slice %3 {offsets = [0, 42], sizes = [8, 128], strides = [1, 1]} : vector<8x256xf32> to vector<8x128xf32>
    %58 = vector.extract_strided_slice %3 {offsets = [0, 43], sizes = [8, 128], strides = [1, 1]} : vector<8x256xf32> to vector<8x128xf32>
    %59 = vector.extract_strided_slice %3 {offsets = [0, 44], sizes = [8, 128], strides = [1, 1]} : vector<8x256xf32> to vector<8x128xf32>
    %60 = vector.extract_strided_slice %3 {offsets = [0, 45], sizes = [8, 128], strides = [1, 1]} : vector<8x256xf32> to vector<8x128xf32>
    %61 = vector.extract_strided_slice %3 {offsets = [0, 46], sizes = [8, 128], strides = [1, 1]} : vector<8x256xf32> to vector<8x128xf32>
    %62 = vector.extract_strided_slice %3 {offsets = [0, 47], sizes = [8, 128], strides = [1, 1]} : vector<8x256xf32> to vector<8x128xf32>
    %63 = tpu.concatenate %47, %48, %49, %50, %51, %52, %53, %54, %55, %56, %57, %58, %59, %60, %61, %62 in 0 : vector<8x128xf32>, vector<8x128xf32>, vector<8x128xf32>, vector<8x128xf32>, vector<8x128xf32>, vector<8x128xf32>, vector<8x128xf32>, vector<8x128xf32>, vector<8x128xf32>, vector<8x128xf32>, vector<8x128xf32>, vector<8x128xf32>, vector<8x128xf32>, vector<8x128xf32>, vector<8x128xf32>, vector<8x128xf32> -> vector<128x128xf32>
    %64 = arith.truncf %63 : vector<128x128xf32> to vector<128x128xbf16>
    %c0_9 = arith.constant 0 : index
    %c256 = arith.constant 256 : index
    %65 = vector.load %arg2[%c0_9, %c256] : memref<24x384xbf16, #tpu.memory_space<vmem>>, vector<24x128xbf16>
    %cst_10 = arith.constant dense<0.000000e+00> : vector<24x128xf32>
    %66 = tpu.matmul %65, %64, %cst_10 {dimension_numbers = #tpu.dot_dimension_numbers<[1], [0], [0], [1], [0, 0, 1, 1], [], []>} : vector<24x128xbf16>, vector<128x128xbf16>, vector<24x128xf32> -> vector<24x128xf32>
    %67 = arith.addf %46, %66 : vector<24x128xf32>
    %c0_11 = arith.constant 0 : index
    %c0_12 = arith.constant 0 : index
    %c0_13 = arith.constant 0 : index
    %68 = vector.load %arg3[%c0_11, %c0_12, %c0_13] : memref<2x24x128xf32, #tpu.memory_space<vmem>>, vector<1x24x128xf32>
    %69 = vector.shape_cast %68 : vector<1x24x128xf32> to vector<24x128xf32>
    %70 = vector.shape_cast %67 : vector<24x128xf32> to vector<1x24x128xf32>
    tpu.vector_store %arg3[%c0_11, %c0_12, %c0_13], %70 {strides = array<i32>} : memref<2x24x128xf32, #tpu.memory_space<vmem>>, vector<1x24x128xf32>,
    %cst_14 = arith.constant dense<0.000000e+00> : vector<24xf32>
    %71 = vector.multi_reduction <add>, %67, %cst_14 [1] : vector<24x128xf32> to vector<24xf32>
    %72 = vector.shape_cast %71 : vector<24xf32> to vector<24x1xf32>
    %73 = arith.addf %0, %72 : vector<24x1xf32>
    %74 = arith.mulf %67, %67 : vector<24x128xf32>
    %cst_15 = arith.constant dense<0.000000e+00> : vector<24xf32>
    %75 = vector.multi_reduction <add>, %74, %cst_15 [1] : vector<24x128xf32> to vector<24xf32>
    %76 = vector.shape_cast %75 : vector<24xf32> to vector<24x1xf32>
    %77 = arith.addf %1, %76 : vector<24x1xf32>
    %c1 = arith.constant 1 : index
    %c0_16 = arith.constant 0 : index
    %c0_17 = arith.constant 0 : index
    %78 = vector.load %arg1[%c1, %c0_16, %c0_17] : memref<2x8x256xf32, #tpu.memory_space<vmem>>, vector<1x8x256xf32>
    %79 = vector.shape_cast %78 : vector<1x8x256xf32> to vector<8x256xf32>
    %cst_18 = arith.constant 0.000000e+00 : f32
    %80 = vector.broadcast %cst_18 : f32 to vector<24x128xf32>
    %81 = vector.extract_strided_slice %79 {offsets = [0, 0], sizes = [8, 128], strides = [1, 1]} : vector<8x256xf32> to vector<8x128xf32>
    %82 = vector.extract_strided_slice %79 {offsets = [0, 1], sizes = [8, 128], strides = [1, 1]} : vector<8x256xf32> to vector<8x128xf32>
    %83 = vector.extract_strided_slice %79 {offsets = [0, 2], sizes = [8, 128], strides = [1, 1]} : vector<8x256xf32> to vector<8x128xf32>
    %84 = vector.extract_strided_slice %79 {offsets = [0, 3], sizes = [8, 128], strides = [1, 1]} : vector<8x256xf32> to vector<8x128xf32>
    %85 = vector.extract_strided_slice %79 {offsets = [0, 4], sizes = [8, 128], strides = [1, 1]} : vector<8x256xf32> to vector<8x128xf32>
    %86 = vector.extract_strided_slice %79 {offsets = [0, 5], sizes = [8, 128], strides = [1, 1]} : vector<8x256xf32> to vector<8x128xf32>
    %87 = vector.extract_strided_slice %79 {offsets = [0, 6], sizes = [8, 128], strides = [1, 1]} : vector<8x256xf32> to vector<8x128xf32>
    %88 = vector.extract_strided_slice %79 {offsets = [0, 7], sizes = [8, 128], strides = [1, 1]} : vector<8x256xf32> to vector<8x128xf32>
    %89 = vector.extract_strided_slice %79 {offsets = [0, 8], sizes = [8, 128], strides = [1, 1]} : vector<8x256xf32> to vector<8x128xf32>
    %90 = vector.extract_strided_slice %79 {offsets = [0, 9], sizes = [8, 128], strides = [1, 1]} : vector<8x256xf32> to vector<8x128xf32>
    %91 = vector.extract_strided_slice %79 {offsets = [0, 10], sizes = [8, 128], strides = [1, 1]} : vector<8x256xf32> to vector<8x128xf32>
    %92 = vector.extract_strided_slice %79 {offsets = [0, 11], sizes = [8, 128], strides = [1, 1]} : vector<8x256xf32> to vector<8x128xf32>
    %93 = vector.extract_strided_slice %79 {offsets = [0, 12], sizes = [8, 128], strides = [1, 1]} : vector<8x256xf32> to vector<8x128xf32>
    %94 = vector.extract_strided_slice %79 {offsets = [0, 13], sizes = [8, 128], strides = [1, 1]} : vector<8x256xf32> to vector<8x128xf32>
    %95 = vector.extract_strided_slice %79 {offsets = [0, 14], sizes = [8, 128], strides = [1, 1]} : vector<8x256xf32> to vector<8x128xf32>
    %96 = vector.extract_strided_slice %79 {offsets = [0, 15], sizes = [8, 128], strides = [1, 1]} : vector<8x256xf32> to vector<8x128xf32>
    %97 = tpu.concatenate %81, %82, %83, %84, %85, %86, %87, %88, %89, %90, %91, %92, %93, %94, %95, %96 in 0 : vector<8x128xf32>, vector<8x128xf32>, vector<8x128xf32>, vector<8x128xf32>, vector<8x128xf32>, vector<8x128xf32>, vector<8x128xf32>, vector<8x128xf32>, vector<8x128xf32>, vector<8x128xf32>, vector<8x128xf32>, vector<8x128xf32>, vector<8x128xf32>, vector<8x128xf32>, vector<8x128xf32>, vector<8x128xf32> -> vector<128x128xf32>
    %98 = arith.truncf %97 : vector<128x128xf32> to vector<128x128xbf16>
    %c0_19 = arith.constant 0 : index
    %c0_20 = arith.constant 0 : index
    %99 = vector.load %arg2[%c0_19, %c0_20] : memref<24x384xbf16, #tpu.memory_space<vmem>>, vector<24x128xbf16>
    %cst_21 = arith.constant dense<0.000000e+00> : vector<24x128xf32>
    %100 = tpu.matmul %99, %98, %cst_21 {dimension_numbers = #tpu.dot_dimension_numbers<[1], [0], [0], [1], [0, 0, 1, 1], [], []>} : vector<24x128xbf16>, vector<128x128xbf16>, vector<24x128xf32> -> vector<24x128xf32>
    %101 = arith.addf %80, %100 : vector<24x128xf32>
    %102 = vector.extract_strided_slice %79 {offsets = [0, 16], sizes = [8, 128], strides = [1, 1]} : vector<8x256xf32> to vector<8x128xf32>
    %103 = vector.extract_strided_slice %79 {offsets = [0, 17], sizes = [8, 128], strides = [1, 1]} : vector<8x256xf32> to vector<8x128xf32>
    %104 = vector.extract_strided_slice %79 {offsets = [0, 18], sizes = [8, 128], strides = [1, 1]} : vector<8x256xf32> to vector<8x128xf32>
    %105 = vector.extract_strided_slice %79 {offsets = [0, 19], sizes = [8, 128], strides = [1, 1]} : vector<8x256xf32> to vector<8x128xf32>
    %106 = vector.extract_strided_slice %79 {offsets = [0, 20], sizes = [8, 128], strides = [1, 1]} : vector<8x256xf32> to vector<8x128xf32>
    %107 = vector.extract_strided_slice %79 {offsets = [0, 21], sizes = [8, 128], strides = [1, 1]} : vector<8x256xf32> to vector<8x128xf32>
    %108 = vector.extract_strided_slice %79 {offsets = [0, 22], sizes = [8, 128], strides = [1, 1]} : vector<8x256xf32> to vector<8x128xf32>
    %109 = vector.extract_strided_slice %79 {offsets = [0, 23], sizes = [8, 128], strides = [1, 1]} : vector<8x256xf32> to vector<8x128xf32>
    %110 = vector.extract_strided_slice %79 {offsets = [0, 24], sizes = [8, 128], strides = [1, 1]} : vector<8x256xf32> to vector<8x128xf32>
    %111 = vector.extract_strided_slice %79 {offsets = [0, 25], sizes = [8, 128], strides = [1, 1]} : vector<8x256xf32> to vector<8x128xf32>
    %112 = vector.extract_strided_slice %79 {offsets = [0, 26], sizes = [8, 128], strides = [1, 1]} : vector<8x256xf32> to vector<8x128xf32>
    %113 = vector.extract_strided_slice %79 {offsets = [0, 27], sizes = [8, 128], strides = [1, 1]} : vector<8x256xf32> to vector<8x128xf32>
    %114 = vector.extract_strided_slice %79 {offsets = [0, 28], sizes = [8, 128], strides = [1, 1]} : vector<8x256xf32> to vector<8x128xf32>
    %115 = vector.extract_strided_slice %79 {offsets = [0, 29], sizes = [8, 128], strides = [1, 1]} : vector<8x256xf32> to vector<8x128xf32>
    %116 = vector.extract_strided_slice %79 {offsets = [0, 30], sizes = [8, 128], strides = [1, 1]} : vector<8x256xf32> to vector<8x128xf32>
    %117 = vector.extract_strided_slice %79 {offsets = [0, 31], sizes = [8, 128], strides = [1, 1]} : vector<8x256xf32> to vector<8x128xf32>
    %118 = tpu.concatenate %102, %103, %104, %105, %106, %107, %108, %109, %110, %111, %112, %113, %114, %115, %116, %117 in 0 : vector<8x128xf32>, vector<8x128xf32>, vector<8x128xf32>, vector<8x128xf32>, vector<8x128xf32>, vector<8x128xf32>, vector<8x128xf32>, vector<8x128xf32>, vector<8x128xf32>, vector<8x128xf32>, vector<8x128xf32>, vector<8x128xf32>, vector<8x128xf32>, vector<8x128xf32>, vector<8x128xf32>, vector<8x128xf32> -> vector<128x128xf32>
    %119 = arith.truncf %118 : vector<128x128xf32> to vector<128x128xbf16>
    %c0_22 = arith.constant 0 : index
    %c128_23 = arith.constant 128 : index
    %120 = vector.load %arg2[%c0_22, %c128_23] : memref<24x384xbf16, #tpu.memory_space<vmem>>, vector<24x128xbf16>
    %cst_24 = arith.constant dense<0.000000e+00> : vector<24x128xf32>
    %121 = tpu.matmul %120, %119, %cst_24 {dimension_numbers = #tpu.dot_dimension_numbers<[1], [0], [0], [1], [0, 0, 1, 1], [], []>} : vector<24x128xbf16>, vector<128x128xbf16>, vector<24x128xf32> -> vector<24x128xf32>
    %122 = arith.addf %101, %121 : vector<24x128xf32>
    %123 = vector.extract_strided_slice %79 {offsets = [0, 32], sizes = [8, 128], strides = [1, 1]} : vector<8x256xf32> to vector<8x128xf32>
    %124 = vector.extract_strided_slice %79 {offsets = [0, 33], sizes = [8, 128], strides = [1, 1]} : vector<8x256xf32> to vector<8x128xf32>
    %125 = vector.extract_strided_slice %79 {offsets = [0, 34], sizes = [8, 128], strides = [1, 1]} : vector<8x256xf32> to vector<8x128xf32>
    %126 = vector.extract_strided_slice %79 {offsets = [0, 35], sizes = [8, 128], strides = [1, 1]} : vector<8x256xf32> to vector<8x128xf32>
    %127 = vector.extract_strided_slice %79 {offsets = [0, 36], sizes = [8, 128], strides = [1, 1]} : vector<8x256xf32> to vector<8x128xf32>
    %128 = vector.extract_strided_slice %79 {offsets = [0, 37], sizes = [8, 128], strides = [1, 1]} : vector<8x256xf32> to vector<8x128xf32>
    %129 = vector.extract_strided_slice %79 {offsets = [0, 38], sizes = [8, 128], strides = [1, 1]} : vector<8x256xf32> to vector<8x128xf32>
    %130 = vector.extract_strided_slice %79 {offsets = [0, 39], sizes = [8, 128], strides = [1, 1]} : vector<8x256xf32> to vector<8x128xf32>
    %131 = vector.extract_strided_slice %79 {offsets = [0, 40], sizes = [8, 128], strides = [1, 1]} : vector<8x256xf32> to vector<8x128xf32>
    %132 = vector.extract_strided_slice %79 {offsets = [0, 41], sizes = [8, 128], strides = [1, 1]} : vector<8x256xf32> to vector<8x128xf32>
    %133 = vector.extract_strided_slice %79 {offsets = [0, 42], sizes = [8, 128], strides = [1, 1]} : vector<8x256xf32> to vector<8x128xf32>
    %134 = vector.extract_strided_slice %79 {offsets = [0, 43], sizes = [8, 128], strides = [1, 1]} : vector<8x256xf32> to vector<8x128xf32>
    %135 = vector.extract_strided_slice %79 {offsets = [0, 44], sizes = [8, 128], strides = [1, 1]} : vector<8x256xf32> to vector<8x128xf32>
    %136 = vector.extract_strided_slice %79 {offsets = [0, 45], sizes = [8, 128], strides = [1, 1]} : vector<8x256xf32> to vector<8x128xf32>
    %137 = vector.extract_strided_slice %79 {offsets = [0, 46], sizes = [8, 128], strides = [1, 1]} : vector<8x256xf32> to vector<8x128xf32>
    %138 = vector.extract_strided_slice %79 {offsets = [0, 47], sizes = [8, 128], strides = [1, 1]} : vector<8x256xf32> to vector<8x128xf32>
    %139 = tpu.concatenate %123, %124, %125, %126, %127, %128, %129, %130, %131, %132, %133, %134, %135, %136, %137, %138 in 0 : vector<8x128xf32>, vector<8x128xf32>, vector<8x128xf32>, vector<8x128xf32>, vector<8x128xf32>, vector<8x128xf32>, vector<8x128xf32>, vector<8x128xf32>, vector<8x128xf32>, vector<8x128xf32>, vector<8x128xf32>, vector<8x128xf32>, vector<8x128xf32>, vector<8x128xf32>, vector<8x128xf32>, vector<8x128xf32> -> vector<128x128xf32>
    %140 = arith.truncf %139 : vector<128x128xf32> to vector<128x128xbf16>
    %c0_25 = arith.constant 0 : index
    %c256_26 = arith.constant 256 : index
    %141 = vector.load %arg2[%c0_25, %c256_26] : memref<24x384xbf16, #tpu.memory_space<vmem>>, vector<24x128xbf16>
    %cst_27 = arith.constant dense<0.000000e+00> : vector<24x128xf32>
    %142 = tpu.matmul %141, %140, %cst_27 {dimension_numbers = #tpu.dot_dimension_numbers<[1], [0], [0], [1], [0, 0, 1, 1], [], []>} : vector<24x128xbf16>, vector<128x128xbf16>, vector<24x128xf32> -> vector<24x128xf32>
    %143 = arith.addf %122, %142 : vector<24x128xf32>
    %c1_28 = arith.constant 1 : index
    %c0_29 = arith.constant 0 : index
    %c0_30 = arith.constant 0 : index
    %144 = vector.load %arg3[%c1_28, %c0_29, %c0_30] : memref<2x24x128xf32, #tpu.memory_space<vmem>>, vector<1x24x128xf32>
    %145 = vector.shape_cast %144 : vector<1x24x128xf32> to vector<24x128xf32>
    %146 = vector.shape_cast %143 : vector<24x128xf32> to vector<1x24x128xf32>
    tpu.vector_store %arg3[%c1_28, %c0_29, %c0_30], %146 {strides = array<i32>} : memref<2x24x128xf32, #tpu.memory_space<vmem>>, vector<1x24x128xf32>,
    %cst_31 = arith.constant dense<0.000000e+00> : vector<24xf32>
    %147 = vector.multi_reduction <add>, %143, %cst_31 [1] : vector<24x128xf32> to vector<24xf32>
    %148 = vector.shape_cast %147 : vector<24xf32> to vector<24x1xf32>
    %149 = arith.addf %73, %148 : vector<24x1xf32>
    %150 = arith.mulf %143, %143 : vector<24x128xf32>
    %cst_32 = arith.constant dense<0.000000e+00> : vector<24xf32>
    %151 = vector.multi_reduction <add>, %150, %cst_32 [1] : vector<24x128xf32> to vector<24xf32>
    %152 = vector.shape_cast %151 : vector<24xf32> to vector<24x1xf32>
    %153 = arith.addf %77, %152 : vector<24x1xf32>
    %c0_33 = arith.constant 0 : index
    %c0_34 = arith.constant 0 : index
    %c0_35 = arith.constant 0 : index
    %154 = vector.load %arg4[%c0_33, %c0_34, %c0_35] : memref<1x24x1xf32, #tpu.memory_space<vmem>>, vector<1x24x1xf32>
    %155 = vector.shape_cast %154 : vector<1x24x1xf32> to vector<24x1xf32>
    %156 = vector.shape_cast %149 : vector<24x1xf32> to vector<1x24x1xf32>
    tpu.vector_store %arg4[%c0_33, %c0_34, %c0_35], %156 {strides = array<i32>} : memref<1x24x1xf32, #tpu.memory_space<vmem>>, vector<1x24x1xf32>,
    %c0_36 = arith.constant 0 : index
    %c0_37 = arith.constant 0 : index
    %c0_38 = arith.constant 0 : index
    %157 = vector.load %arg5[%c0_36, %c0_37, %c0_38] : memref<1x24x1xf32, #tpu.memory_space<vmem>>, vector<1x24x1xf32>
    %158 = vector.shape_cast %157 : vector<1x24x1xf32> to vector<24x1xf32>
    %159 = vector.shape_cast %153 : vector<24x1xf32> to vector<1x24x1xf32>
    tpu.vector_store %arg5[%c0_36, %c0_37, %c0_38], %159 {strides = array<i32>} : memref<1x24x1xf32, #tpu.memory_space<vmem>>, vector<1x24x1xf32>,
    return
  }
  func.func @transform_0(%arg0: i32) -> (i32, i32, i32) {
    %c0_i32 = arith.constant 0 : i32
    %c0_i32_0 = arith.constant 0 : i32
    %c0_i32_1 = arith.constant 0 : i32
    return %arg0, %c0_i32, %c0_i32_0 : i32, i32, i32
  }
  func.func @transform_1(%arg0: i32) -> (i32, i32) {
    %c0_i32 = arith.constant 0 : i32
    %c0_i32_0 = arith.constant 0 : i32
    %c0_i32_1 = arith.constant 0 : i32
    return %c0_i32, %c0_i32_0 : i32, i32
  }
  func.func @transform_2(%arg0: i32) -> (i32, i32, i32) {
    %c0_i32 = arith.constant 0 : i32
    %c0_i32_0 = arith.constant 0 : i32
    %c0_i32_1 = arith.constant 0 : i32
    return %arg0, %c0_i32, %c0_i32_0 : i32, i32, i32
  }
  func.func @transform_3(%arg0: i32) -> (i32, i32, i32) {
    %c0_i32 = arith.constant 0 : i32
    %c0_i32_0 = arith.constant 0 : i32
    %c0_i32_1 = arith.constant 0 : i32
    return %arg0, %c0_i32, %c0_i32_0 : i32, i32, i32
  }
  func.func @transform_4(%arg0: i32) -> (i32, i32, i32) {
    %c0_i32 = arith.constant 0 : i32
    %c0_i32_0 = arith.constant 0 : i32
    %c0_i32_1 = arith.constant 0 : i32
    return %arg0, %c0_i32, %c0_i32_0 : i32, i32, i32
  }
}

</mosaic_0001>

<llo_original>
// kernel: tpu_custom_call.1
$region0: #{tpu_custom_call.1}
  #allocation0 [shape = 'u32[]', space=smem, size = 0x4, offset = 0x4, fixed_abs, tag = 'smem constant byte address 0x4 - core index']
  #allocation1 [shape = 'u32[144,128]{1,0:T(1,128)}', space=vmem, size = 0x12000, scoped, tag = 'internal scratch']
  %s0 = inlined_call_operand.hbm [shape: f32[2,8,256], index: 0, kind: input, shape index: {}]
  %s1 = inlined_call_operand.hbm [shape: bf16[24,384], index: 1, kind: input, shape index: {}]
  %s2 = inlined_call_operand.hbm [shape: f32[2,24,128], index: 2, kind: output, shape index: {0}]
  %s3 = inlined_call_operand.vmem [shape: f32[1,24,1], index: 3, kind: output, shape index: {1}]
  %s4 = inlined_call_operand.vmem [shape: f32[1,24,1], index: 4, kind: output, shape index: {2}]
  %5 = xla_tuple %s2, %s3, %s4
  %s6 = sld [smem:[#allocation0]]
  $region42: #{tpu_custom_call.1} parent=0
    _
  %s8 = ssub.s32 1, %s6
  %s9 = scalar_select 0, %s8, %s6
  $region1: #{tpu_custom_call.1} parent=0
    #allocation2 [shape = 'u8[16384]{0}', space=vmem, size = 0x4000, scoped, tag = 'input window, operand 0, single buffered']
    #allocation3 [shape = 's32[1]{0}', space=sflag, size = 0x4, scoped, tag = 'scoped memory for tpu_custom_call.1']
    #allocation4 [shape = 's32[1]{0}', space=sflag, size = 0x4, scoped, tag = 'scoped memory for tpu_custom_call.1']
    #allocation5 [shape = 'u8[18432]{0}', space=vmem, size = 0x4800, scoped, tag = 'input window, operand 1, single buffered']
    #allocation6 [shape = 's32[1]{0}', space=sflag, size = 0x4, scoped, tag = 'scoped memory for tpu_custom_call.1']
    #allocation7 [shape = 'u8[24576]{0}', space=vmem, size = 0x6000, scoped, tag = 'output window, operand 0, single buffered']
    %10 = vsyncpa [#allocation3], 0
    %11 = vsyncpa [#allocation6], 0
    %12 = vsyncpa [#allocation4], 0
    // Predicated region
    $region2: #{tpu_custom_call.1} parent=1 // pred_check
      _
    $region3: #{tpu_custom_call.1} parent=1 // pred_check_branch
      %14 = sbr.rel (0) target = $region5
    $region4: #{tpu_custom_call.1} parent=1 // pred_region
      %s16 = ssub.s32 512, 512
      %17 = vsyncadd [#allocation3], %s16
      %s18 = sshll.u32 [#allocation2], 4
      %s19 = int_to_ptr.vmem [resolvable:$true] %s18
      %24 = dma.hbm_to_vmem [thread:$0]  %s0, 512, %s19, [#allocation3], 256, 256, 16
    $region5: #{tpu_custom_call.1} parent=1 // pred_fallthru
      _
    // Predicated region
    $region6: #{tpu_custom_call.1} parent=1 // pred_check
      _
    $region7: #{tpu_custom_call.1} parent=1 // pred_check_branch
      %26 = sbr.rel (0) target = $region9
    $region8: #{tpu_custom_call.1} parent=1 // pred_region
      %s28 = ssub.s32 576, 576
      %29 = vsyncadd [#allocation6], %s28
      %s30 = sshll.u32 [#allocation5], 4
      %s31 = int_to_ptr.vmem [resolvable:$true] %s30
      %36 = dma.hbm_to_vmem [thread:$0]  %s1, 576, %s31, [#allocation6], 192, 192, 12
    $region9: #{tpu_custom_call.1} parent=1 // pred_fallthru
      _
    // Predicated region
    $region10: #{tpu_custom_call.1} parent=1 // pred_check
      _
    $region11: #{tpu_custom_call.1} parent=1 // pred_check_branch
      %38 = sbr.rel (0) target = $region13
    $region12: #{tpu_custom_call.1} parent=1 // pred_region
      %39 = dma.done [#allocation3], 512
    $region13: #{tpu_custom_call.1} parent=1 // pred_fallthru
      _
    // Predicated region
    $region14: #{tpu_custom_call.1} parent=1 // pred_check
      _
    $region15: #{tpu_custom_call.1} parent=1 // pred_check_branch
      %41 = sbr.rel (0) target = $region17
    $region16: #{tpu_custom_call.1} parent=1 // pred_region
      %42 = dma.done [#allocation6], 576
    $region17: #{tpu_custom_call.1} parent=1 // pred_fallthru
      _
    %v44 = vld [vmem:[#allocation2] sm:$0xff]
    %v45 = vld [vmem:[#allocation2 + $0x8] sm:$0xff]
    %48 = vrot.lane.b32.xlu0 %v44, 127
    %v49 = vpop.permute.xlu0 %48
    %50 = vrot.lane.b32.xlu0 %v45, 127
    %v51 = vpop.permute.xlu0 %50
    %vm52 = vcmask 1039360
    %v53 = vsel %vm52, %v49, %v51
    %55 = vrot.lane.b32.xlu0 %v44, 126
    %v56 = vpop.permute.xlu0 %55
    %57 = vrot.lane.b32.xlu0 %v45, 126
    %v58 = vpop.permute.xlu0 %57
    %vm59 = vcmask 1031168
    %v60 = vsel %vm59, %v56, %v58
    %62 = vrot.lane.b32.xlu0 %v44, 125
    %v63 = vpop.permute.xlu0 %62
    %64 = vrot.lane.b32.xlu0 %v45, 125
    %v65 = vpop.permute.xlu0 %64
    %vm66 = vcmask 1022976
    %v67 = vsel %vm66, %v63, %v65
    %69 = vrot.lane.b32.xlu0 %v44, 124
    %v70 = vpop.permute.xlu0 %69
    %71 = vrot.lane.b32.xlu0 %v45, 124
    %v72 = vpop.permute.xlu0 %71
    %vm73 = vcmask 1014784
    %v74 = vsel %vm73, %v70, %v72
    %76 = vrot.lane.b32.xlu0 %v44, 123
    %v77 = vpop.permute.xlu0 %76
    %78 = vrot.lane.b32.xlu0 %v45, 123
    %v79 = vpop.permute.xlu0 %78
    %vm80 = vcmask 1006592
    %v81 = vsel %vm80, %v77, %v79
    %83 = vrot.lane.b32.xlu0 %v44, 122
    %v84 = vpop.permute.xlu0 %83
    %85 = vrot.lane.b32.xlu0 %v45, 122
    %v86 = vpop.permute.xlu0 %85
    %vm87 = vcmask 998400
    %v88 = vsel %vm87, %v84, %v86
    %90 = vrot.lane.b32.xlu0 %v44, 121
    %v91 = vpop.permute.xlu0 %90
    %92 = vrot.lane.b32.xlu0 %v45, 121
    %v93 = vpop.permute.xlu0 %92
    %vm94 = vcmask 990208
    %v95 = vsel %vm94, %v91, %v93
    %97 = vrot.lane.b32.xlu0 %v44, 120
    %v98 = vpop.permute.xlu0 %97
    %99 = vrot.lane.b32.xlu0 %v45, 120
    %v100 = vpop.permute.xlu0 %99
    %vm101 = vcmask 982016
    %v102 = vsel %vm101, %v98, %v100
    %104 = vrot.lane.b32.xlu0 %v44, 119
    %v105 = vpop.permute.xlu0 %104
    %106 = vrot.lane.b32.xlu0 %v45, 119
    %v107 = vpop.permute.xlu0 %106
    %vm108 = vcmask 973824
    %v109 = vsel %vm108, %v105, %v107
    %111 = vrot.lane.b32.xlu0 %v44, 118
    %v112 = vpop.permute.xlu0 %111
    %113 = vrot.lane.b32.xlu0 %v45, 118
    %v114 = vpop.permute.xlu0 %113
    %vm115 = vcmask 965632
    %v116 = vsel %vm115, %v112, %v114
    %118 = vrot.lane.b32.xlu0 %v44, 117
    %v119 = vpop.permute.xlu0 %118
    %120 = vrot.lane.b32.xlu0 %v45, 117
    %v121 = vpop.permute.xlu0 %120
    %vm122 = vcmask 957440
    %v123 = vsel %vm122, %v119, %v121
    %125 = vrot.lane.b32.xlu0 %v44, 116
    %v126 = vpop.permute.xlu0 %125
    %127 = vrot.lane.b32.xlu0 %v45, 116
    %v128 = vpop.permute.xlu0 %127
    %vm129 = vcmask 949248
    %v130 = vsel %vm129, %v126, %v128
    %132 = vrot.lane.b32.xlu0 %v44, 115
    %v133 = vpop.permute.xlu0 %132
    %134 = vrot.lane.b32.xlu0 %v45, 115
    %v135 = vpop.permute.xlu0 %134
    %vm136 = vcmask 941056
    %v137 = vsel %vm136, %v133, %v135
    %139 = vrot.lane.b32.xlu0 %v44, 114
    %v140 = vpop.permute.xlu0 %139
    %141 = vrot.lane.b32.xlu0 %v45, 114
    %v142 = vpop.permute.xlu0 %141
    %vm143 = vcmask 932864
    %v144 = vsel %vm143, %v140, %v142
    %146 = vrot.lane.b32.xlu0 %v44, 113
    %v147 = vpop.permute.xlu0 %146
    %148 = vrot.lane.b32.xlu0 %v45, 113
    %v149 = vpop.permute.xlu0 %148
    %vm150 = vcmask 924672
    %v151 = vsel %vm150, %v147, %v149
    %v153 = vpack.c.bf16 %v53, %v44
    %v154 = vpack.c.bf16 %v67, %v60
    %v155 = vpack.c.bf16 %v81, %v74
    %v156 = vpack.c.bf16 %v95, %v88
    %v157 = vpack.c.bf16 %v109, %v102
    %v158 = vpack.c.bf16 %v123, %v116
    %v159 = vpack.c.bf16 %v137, %v130
    %v160 = vpack.c.bf16 %v151, %v144
    %v161 = vld [vmem:[#allocation5] sm:$0xf]
    %v162 = vld [vmem:[#allocation5 + $0xc] sm:$0xf]
    %v163 = vld [vmem:[#allocation5 + $0x18] sm:$0xf]
    %v179 = vpack.c.bf16 %v51, %v45
    %v180 = vpack.c.bf16 %v65, %v58
    %v181 = vpack.c.bf16 %v79, %v72
    %v182 = vpack.c.bf16 %v93, %v86
    %v183 = vpack.c.bf16 %v107, %v100
    %v184 = vpack.c.bf16 %v121, %v114
    %v185 = vpack.c.bf16 %v135, %v128
    %v186 = vpack.c.bf16 %v149, %v142
    %v187 = vld [vmem:[#allocation5 + $0x4] sm:$0xf]
    %v188 = vld [vmem:[#allocation5 + $0x10] sm:$0xf]
    %v189 = vld [vmem:[#allocation5 + $0x1c] sm:$0xf]
    %v193 = vunpack.c.l.b16 %v187
    %v194 = vunpack.c.l.b16 %v188
    %v195 = vunpack.c.l.b16 %v189
    %v196 = vpack.c.b16 %v194, %v193
    %v197 = vpack.c.b16 %v195, %v195
    %216 = vrot.lane.b32.xlu0 %v153, 112
    %v217 = vpop.permute.xlu0 %216
    %218 = vrot.lane.b32.xlu0 %v179, 112
    %v219 = vpop.permute.xlu0 %218
    %220 = vrot.lane.b32.xlu0 %v154, 112
    %v221 = vpop.permute.xlu0 %220
    %222 = vrot.lane.b32.xlu0 %v180, 112
    %v223 = vpop.permute.xlu0 %222
    %224 = vrot.lane.b32.xlu0 %v155, 112
    %v225 = vpop.permute.xlu0 %224
    %226 = vrot.lane.b32.xlu0 %v181, 112
    %v227 = vpop.permute.xlu0 %226
    %228 = vrot.lane.b32.xlu0 %v156, 112
    %v229 = vpop.permute.xlu0 %228
    %230 = vrot.lane.b32.xlu0 %v182, 112
    %v231 = vpop.permute.xlu0 %230
    %232 = vrot.lane.b32.xlu0 %v157, 112
    %v233 = vpop.permute.xlu0 %232
    %234 = vrot.lane.b32.xlu0 %v183, 112
    %v235 = vpop.permute.xlu0 %234
    %236 = vrot.lane.b32.xlu0 %v158, 112
    %v237 = vpop.permute.xlu0 %236
    %238 = vrot.lane.b32.xlu0 %v184, 112
    %v239 = vpop.permute.xlu0 %238
    %240 = vrot.lane.b32.xlu0 %v159, 112
    %v241 = vpop.permute.xlu0 %240
    %242 = vrot.lane.b32.xlu0 %v185, 112
    %v243 = vpop.permute.xlu0 %242
    %244 = vrot.lane.b32.xlu0 %v160, 112
    %v245 = vpop.permute.xlu0 %244
    %246 = vrot.lane.b32.xlu0 %v186, 112
    %v247 = vpop.permute.xlu0 %246
    %vm248 = vcmask 916480
    %v249 = vsel %vm248, %v217, %v219
    %v250 = vsel %vm248, %v221, %v223
    %v251 = vsel %vm248, %v225, %v227
    %v252 = vsel %vm248, %v229, %v231
    %v253 = vsel %vm248, %v233, %v235
    %v254 = vsel %vm248, %v237, %v239
    %v255 = vsel %vm248, %v241, %v243
    %v256 = vsel %vm248, %v245, %v247
    %265 = vmatprep.subr.bf16.mxu0 0
    %266 = vmatpush1.bf16.msra.mxu0 %v256
    %267 = vmatprep.subr.bf16.mxu0 0
    %268 = vmatpush1.bf16.msra.mxu0 %v255
    %269 = vmatprep.subr.bf16.mxu0 0
    %270 = vmatpush1.bf16.msra.mxu0 %v254
    %271 = vmatprep.subr.bf16.mxu0 0
    %272 = vmatpush1.bf16.msra.mxu0 %v253
    %273 = vmatprep.subr.bf16.mxu0 0
    %274 = vmatpush1.bf16.msra.mxu0 %v252
    %275 = vmatprep.subr.bf16.mxu0 0
    %276 = vmatpush1.bf16.msra.mxu0 %v251
    %277 = vmatprep.subr.bf16.mxu0 0
    %278 = vmatpush1.bf16.msra.mxu0 %v250
    %279 = vmatprep.subr.bf16.mxu0 0
    %280 = vmatpush1.bf16.msra.mxu0 %v249
    %281 = vmatprep.subr.bf16.mxu0 0
    %282 = vmatpush2.bf16.msra.mxu0 0
    %283 = vmatprep.subr.bf16.mxu0 0
    %284 = vmatpush2.bf16.msra.mxu0 0
    %285 = vmatprep.subr.bf16.mxu0 0
    %286 = vmatpush2.bf16.msra.mxu0 0
    %287 = vmatprep.subr.bf16.mxu0 0
    %288 = vmatpush2.bf16.msra.mxu0 0
    %289 = vmatprep.subr.bf16.mxu0 0
    %290 = vmatpush2.bf16.msra.mxu0 0
    %291 = vmatprep.subr.bf16.mxu0 0
    %292 = vmatpush2.bf16.msra.mxu0 0
    %293 = vmatprep.subr.bf16.mxu0 0
    %294 = vmatpush2.bf16.msra.mxu0 0
    %295 = vmatprep.subr.bf16.mxu0 0
    %296 = vmatpush2.bf16.msra.mxu0 0
    %297 = vmatprep.mubr.bf16.mxu0 0
    %298 = vmatmul.mubr.bf16.gmra.mxu0 %v196
    %v299 = vpop.f32.mrf.mxu0
    %v300 = vadd.f32 0.0, %v299
    %v301 = vpop.f32.mrf.mxu0
    %v302 = vpop.f32.mrf.mxu0
    %v303 = vadd.f32 0.0, %v302
    %v304 = vpop.f32.mrf.mxu0
    %305 = vmatprep.mubr.bf16.mxu0 0
    %306 = vmatmul.mubr.bf16.gmra.mxu0 %v197
    %v307 = vpop.f32.mrf.mxu0
    %v308 = vadd.f32 0.0, %v307
    %v309 = vpop.f32.mrf.mxu0
    %v310 = vpop.f32.mrf.mxu0
    %v311 = vpop.f32.mrf.mxu0
    %312 = vdwg.mxu0
    %v316 = vunpack.c.l.b16 %v161
    %v317 = vunpack.c.l.b16 %v162
    %v318 = vunpack.c.l.b16 %v163
    %v319 = vpack.c.b16 %v317, %v316
    %v320 = vpack.c.b16 %v318, %v318
    %323 = vmatprep.subr.bf16.mxu0 0
    %324 = vmatpush1.bf16.msra.mxu0 %v160
    %325 = vmatprep.subr.bf16.mxu0 0
    %326 = vmatpush1.bf16.msra.mxu0 %v159
    %327 = vmatprep.subr.bf16.mxu0 0
    %328 = vmatpush1.bf16.msra.mxu0 %v158
    %329 = vmatprep.subr.bf16.mxu0 0
    %330 = vmatpush1.bf16.msra.mxu0 %v157
    %331 = vmatprep.subr.bf16.mxu0 0
    %332 = vmatpush1.bf16.msra.mxu0 %v156
    %333 = vmatprep.subr.bf16.mxu0 0
    %334 = vmatpush1.bf16.msra.mxu0 %v155
    %335 = vmatprep.subr.bf16.mxu0 0
    %336 = vmatpush1.bf16.msra.mxu0 %v154
    %337 = vmatprep.subr.bf16.mxu0 0
    %338 = vmatpush1.bf16.msra.mxu0 %v153
    %339 = vmatprep.subr.bf16.mxu0 0
    %340 = vmatpush2.bf16.msra.mxu0 0
    %341 = vmatprep.subr.bf16.mxu0 0
    %342 = vmatpush2.bf16.msra.mxu0 0
    %343 = vmatprep.subr.bf16.mxu0 0
    %344 = vmatpush2.bf16.msra.mxu0 0
    %345 = vmatprep.subr.bf16.mxu0 0
    %346 = vmatpush2.bf16.msra.mxu0 0
    %347 = vmatprep.subr.bf16.mxu0 0
    %348 = vmatpush2.bf16.msra.mxu0 0
    %349 = vmatprep.subr.bf16.mxu0 0
    %350 = vmatpush2.bf16.msra.mxu0 0
    %351 = vmatprep.subr.bf16.mxu0 0
    %352 = vmatpush2.bf16.msra.mxu0 0
    %353 = vmatprep.subr.bf16.mxu0 0
    %354 = vmatpush2.bf16.msra.mxu0 0
    %355 = vmatprep.mubr.bf16.mxu0 0
    %356 = vmatmul.mubr.bf16.gmra.mxu0 %v319
    %v357 = vpop.f32.mrf.mxu0
    %v358 = vadd.f32 %v300, %v357
    %v359 = vpop.f32.mrf.mxu0
    %v360 = vpop.f32.mrf.mxu0
    %v361 = vadd.f32 %v303, %v360
    %v362 = vpop.f32.mrf.mxu0
    %363 = vmatprep.mubr.bf16.mxu0 0
    %364 = vmatmul.mubr.bf16.gmra.mxu0 %v320
    %v365 = vpop.f32.mrf.mxu0
    %v366 = vadd.f32 %v308, %v365
    %v367 = vpop.f32.mrf.mxu0
    %v368 = vpop.f32.mrf.mxu0
    %v369 = vpop.f32.mrf.mxu0
    %370 = vdwg.mxu0
    %v371 = vld [vmem:[#allocation5 + $0x8] sm:$0xf]
    %v372 = vld [vmem:[#allocation5 + $0x14] sm:$0xf]
    %v373 = vld [vmem:[#allocation5 + $0x20] sm:$0xf]
    %v377 = vunpack.c.l.b16 %v371
    %v378 = vunpack.c.l.b16 %v372
    %v379 = vunpack.c.l.b16 %v373
    %v380 = vpack.c.b16 %v378, %v377
    %v381 = vpack.c.b16 %v379, %v379
    %384 = vrot.lane.b32.xlu0 %v153, 96
    %v385 = vpop.permute.xlu0 %384
    %386 = vrot.lane.b32.xlu0 %v179, 96
    %v387 = vpop.permute.xlu0 %386
    %388 = vrot.lane.b32.xlu0 %v154, 96
    %v389 = vpop.permute.xlu0 %388
    %390 = vrot.lane.b32.xlu0 %v180, 96
    %v391 = vpop.permute.xlu0 %390
    %392 = vrot.lane.b32.xlu0 %v155, 96
    %v393 = vpop.permute.xlu0 %392
    %394 = vrot.lane.b32.xlu0 %v181, 96
    %v395 = vpop.permute.xlu0 %394
    %396 = vrot.lane.b32.xlu0 %v156, 96
    %v397 = vpop.permute.xlu0 %396
    %398 = vrot.lane.b32.xlu0 %v182, 96
    %v399 = vpop.permute.xlu0 %398
    %400 = vrot.lane.b32.xlu0 %v157, 96
    %v401 = vpop.permute.xlu0 %400
    %402 = vrot.lane.b32.xlu0 %v183, 96
    %v403 = vpop.permute.xlu0 %402
    %404 = vrot.lane.b32.xlu0 %v158, 96
    %v405 = vpop.permute.xlu0 %404
    %406 = vrot.lane.b32.xlu0 %v184, 96
    %v407 = vpop.permute.xlu0 %406
    %408 = vrot.lane.b32.xlu0 %v159, 96
    %v409 = vpop.permute.xlu0 %408
    %410 = vrot.lane.b32.xlu0 %v185, 96
    %v411 = vpop.permute.xlu0 %410
    %412 = vrot.lane.b32.xlu0 %v160, 96
    %v413 = vpop.permute.xlu0 %412
    %414 = vrot.lane.b32.xlu0 %v186, 96
    %v415 = vpop.permute.xlu0 %414
    %vm416 = vcmask 785408
    %v417 = vsel %vm416, %v385, %v387
    %v418 = vsel %vm416, %v389, %v391
    %v419 = vsel %vm416, %v393, %v395
    %v420 = vsel %vm416, %v397, %v399
    %v421 = vsel %vm416, %v401, %v403
    %v422 = vsel %vm416, %v405, %v407
    %v423 = vsel %vm416, %v409, %v411
    %v424 = vsel %vm416, %v413, %v415
    %433 = vmatprep.subr.bf16.mxu0 0
    %434 = vmatpush1.bf16.msra.mxu0 %v424
    %435 = vmatprep.subr.bf16.mxu0 0
    %436 = vmatpush1.bf16.msra.mxu0 %v423
    %437 = vmatprep.subr.bf16.mxu0 0
    %438 = vmatpush1.bf16.msra.mxu0 %v422
    %439 = vmatprep.subr.bf16.mxu0 0
    %440 = vmatpush1.bf16.msra.mxu0 %v421
    %441 = vmatprep.subr.bf16.mxu0 0
    %442 = vmatpush1.bf16.msra.mxu0 %v420
    %443 = vmatprep.subr.bf16.mxu0 0
    %444 = vmatpush1.bf16.msra.mxu0 %v419
    %445 = vmatprep.subr.bf16.mxu0 0
    %446 = vmatpush1.bf16.msra.mxu0 %v418
    %447 = vmatprep.subr.bf16.mxu0 0
    %448 = vmatpush1.bf16.msra.mxu0 %v417
    %449 = vmatprep.subr.bf16.mxu0 0
    %450 = vmatpush2.bf16.msra.mxu0 0
    %451 = vmatprep.subr.bf16.mxu0 0
    %452 = vmatpush2.bf16.msra.mxu0 0
    %453 = vmatprep.subr.bf16.mxu0 0
    %454 = vmatpush2.bf16.msra.mxu0 0
    %455 = vmatprep.subr.bf16.mxu0 0
    %456 = vmatpush2.bf16.msra.mxu0 0
    %457 = vmatprep.subr.bf16.mxu0 0
    %458 = vmatpush2.bf16.msra.mxu0 0
    %459 = vmatprep.subr.bf16.mxu0 0
    %460 = vmatpush2.bf16.msra.mxu0 0
    %461 = vmatprep.subr.bf16.mxu0 0
    %462 = vmatpush2.bf16.msra.mxu0 0
    %463 = vmatprep.subr.bf16.mxu0 0
    %464 = vmatpush2.bf16.msra.mxu0 0
    %465 = vmatprep.mubr.bf16.mxu0 0
    %466 = vmatmul.mubr.bf16.gmra.mxu0 %v380
    %v467 = vpop.f32.mrf.mxu0
    %v468 = vadd.f32 0.0, %v467
    %v469 = vpop.f32.mrf.mxu0
    %v470 = vpop.f32.mrf.mxu0
    %v471 = vadd.f32 0.0, %v470
    %v472 = vpop.f32.mrf.mxu0
    %473 = vmatprep.mubr.bf16.mxu0 0
    %474 = vmatmul.mubr.bf16.gmra.mxu0 %v381
    %v475 = vpop.f32.mrf.mxu0
    %v476 = vadd.f32 0.0, %v475
    %v477 = vpop.f32.mrf.mxu0
    %v478 = vpop.f32.mrf.mxu0
    %v479 = vpop.f32.mrf.mxu0
    %480 = vdwg.mxu0
    %v481 = vadd.f32 %v358, %v468
    %v482 = vadd.f32 %v361, %v471
    %v483 = vadd.f32 %v366, %v476
    %484 = vst [vmem:[#allocation7] sm:$0xff] %v481
    %485 = vst [vmem:[#allocation7 + $0x8] sm:$0xff] %v482
    %486 = vst [vmem:[#allocation7 + $0x10] sm:$0xff] %v483
    %487 = vadd.xlane.f32.xlu0 %v481
    %v488 = vpop.xlane.xlu0 %487
    %489 = vadd.xlane.f32.xlu0 %v482
    %v490 = vpop.xlane.xlu0 %489
    %491 = vadd.xlane.f32.xlu0 %v483
    %v492 = vpop.xlane.xlu0 %491
    %v493 = vadd.f32 %v488, 0.0
    %v494 = vadd.f32 %v490, 0.0
    %v495 = vadd.f32 %v492, 0.0
    %v496 = vmul.f32 %v481, %v481
    %v497 = vmul.f32 %v482, %v482
    %v498 = vmul.f32 %v483, %v483
    %499 = vadd.xlane.f32.xlu0 %v496
    %v500 = vpop.xlane.xlu0 %499
    %501 = vadd.xlane.f32.xlu0 %v497
    %v502 = vpop.xlane.xlu0 %501
    %503 = vadd.xlane.f32.xlu0 %v498
    %v504 = vpop.xlane.xlu0 %503
    %v505 = vadd.f32 %v500, 0.0
    %v506 = vadd.f32 %v502, 0.0
    %v507 = vadd.f32 %v504, 0.0
    %s508 = scalar_lea.vmem [#allocation2], 16
    %v509 = vld [vmem:[%s508] sm:$0xff]
    %v510 = vld [vmem:[%s508 + $0x8] sm:$0xff]
    %513 = vrot.lane.b32.xlu0 %v509, 127
    %v514 = vpop.permute.xlu0 %513
    %515 = vrot.lane.b32.xlu0 %v510, 127
    %v516 = vpop.permute.xlu0 %515
    %v517 = vsel %vm52, %v514, %v516
    %519 = vrot.lane.b32.xlu0 %v509, 126
    %v520 = vpop.permute.xlu0 %519
    %521 = vrot.lane.b32.xlu0 %v510, 126
    %v522 = vpop.permute.xlu0 %521
    %v523 = vsel %vm59, %v520, %v522
    %525 = vrot.lane.b32.xlu0 %v509, 125
    %v526 = vpop.permute.xlu0 %525
    %527 = vrot.lane.b32.xlu0 %v510, 125
    %v528 = vpop.permute.xlu0 %527
    %v529 = vsel %vm66, %v526, %v528
    %531 = vrot.lane.b32.xlu0 %v509, 124
    %v532 = vpop.permute.xlu0 %531
    %533 = vrot.lane.b32.xlu0 %v510, 124
    %v534 = vpop.permute.xlu0 %533
    %v535 = vsel %vm73, %v532, %v534
    %537 = vrot.lane.b32.xlu0 %v509, 123
    %v538 = vpop.permute.xlu0 %537
    %539 = vrot.lane.b32.xlu0 %v510, 123
    %v540 = vpop.permute.xlu0 %539
    %v541 = vsel %vm80, %v538, %v540
    %543 = vrot.lane.b32.xlu0 %v509, 122
    %v544 = vpop.permute.xlu0 %543
    %545 = vrot.lane.b32.xlu0 %v510, 122
    %v546 = vpop.permute.xlu0 %545
    %v547 = vsel %vm87, %v544, %v546
    %549 = vrot.lane.b32.xlu0 %v509, 121
    %v550 = vpop.permute.xlu0 %549
    %551 = vrot.lane.b32.xlu0 %v510, 121
    %v552 = vpop.permute.xlu0 %551
    %v553 = vsel %vm94, %v550, %v552
    %555 = vrot.lane.b32.xlu0 %v509, 120
    %v556 = vpop.permute.xlu0 %555
    %557 = vrot.lane.b32.xlu0 %v510, 120
    %v558 = vpop.permute.xlu0 %557
    %v559 = vsel %vm101, %v556, %v558
    %561 = vrot.lane.b32.xlu0 %v509, 119
    %v562 = vpop.permute.xlu0 %561
    %563 = vrot.lane.b32.xlu0 %v510, 119
    %v564 = vpop.permute.xlu0 %563
    %v565 = vsel %vm108, %v562, %v564
    %567 = vrot.lane.b32.xlu0 %v509, 118
    %v568 = vpop.permute.xlu0 %567
    %569 = vrot.lane.b32.xlu0 %v510, 118
    %v570 = vpop.permute.xlu0 %569
    %v571 = vsel %vm115, %v568, %v570
    %573 = vrot.lane.b32.xlu0 %v509, 117
    %v574 = vpop.permute.xlu0 %573
    %575 = vrot.lane.b32.xlu0 %v510, 117
    %v576 = vpop.permute.xlu0 %575
    %v577 = vsel %vm122, %v574, %v576
    %579 = vrot.lane.b32.xlu0 %v509, 116
    %v580 = vpop.permute.xlu0 %579
    %581 = vrot.lane.b32.xlu0 %v510, 116
    %v582 = vpop.permute.xlu0 %581
    %v583 = vsel %vm129, %v580, %v582
    %585 = vrot.lane.b32.xlu0 %v509, 115
    %v586 = vpop.permute.xlu0 %585
    %587 = vrot.lane.b32.xlu0 %v510, 115
    %v588 = vpop.permute.xlu0 %587
    %v589 = vsel %vm136, %v586, %v588
    %591 = vrot.lane.b32.xlu0 %v509, 114
    %v592 = vpop.permute.xlu0 %591
    %593 = vrot.lane.b32.xlu0 %v510, 114
    %v594 = vpop.permute.xlu0 %593
    %v595 = vsel %vm143, %v592, %v594
    %597 = vrot.lane.b32.xlu0 %v509, 113
    %v598 = vpop.permute.xlu0 %597
    %599 = vrot.lane.b32.xlu0 %v510, 113
    %v600 = vpop.permute.xlu0 %599
    %v601 = vsel %vm150, %v598, %v600
    %v603 = vpack.c.bf16 %v517, %v509
    %v604 = vpack.c.bf16 %v529, %v523
    %v605 = vpack.c.bf16 %v541, %v535
    %v606 = vpack.c.bf16 %v553, %v547
    %v607 = vpack.c.bf16 %v565, %v559
    %v608 = vpack.c.bf16 %v577, %v571
    %v609 = vpack.c.bf16 %v589, %v583
    %v610 = vpack.c.bf16 %v601, %v595
    %v611 = vld [vmem:[#allocation5] sm:$0xf]
    %v612 = vld [vmem:[#allocation5 + $0xc] sm:$0xf]
    %v613 = vld [vmem:[#allocation5 + $0x18] sm:$0xf]
    %v629 = vpack.c.bf16 %v516, %v510
    %v630 = vpack.c.bf16 %v528, %v522
    %v631 = vpack.c.bf16 %v540, %v534
    %v632 = vpack.c.bf16 %v552, %v546
    %v633 = vpack.c.bf16 %v564, %v558
    %v634 = vpack.c.bf16 %v576, %v570
    %v635 = vpack.c.bf16 %v588, %v582
    %v636 = vpack.c.bf16 %v600, %v594
    %v637 = vld [vmem:[#allocation5 + $0x4] sm:$0xf]
    %v638 = vld [vmem:[#allocation5 + $0x10] sm:$0xf]
    %v639 = vld [vmem:[#allocation5 + $0x1c] sm:$0xf]
    %v643 = vunpack.c.l.b16 %v637
    %v644 = vunpack.c.l.b16 %v638
    %v645 = vunpack.c.l.b16 %v639
    %v646 = vpack.c.b16 %v644, %v643
    %v647 = vpack.c.b16 %v645, %v645
    %666 = vrot.lane.b32.xlu0 %v603, 112
    %v667 = vpop.permute.xlu0 %666
    %668 = vrot.lane.b32.xlu0 %v629, 112
    %v669 = vpop.permute.xlu0 %668
    %670 = vrot.lane.b32.xlu0 %v604, 112
    %v671 = vpop.permute.xlu0 %670
    %672 = vrot.lane.b32.xlu0 %v630, 112
    %v673 = vpop.permute.xlu0 %672
    %674 = vrot.lane.b32.xlu0 %v605, 112
    %v675 = vpop.permute.xlu0 %674
    %676 = vrot.lane.b32.xlu0 %v631, 112
    %v677 = vpop.permute.xlu0 %676
    %678 = vrot.lane.b32.xlu0 %v606, 112
    %v679 = vpop.permute.xlu0 %678
    %680 = vrot.lane.b32.xlu0 %v632, 112
    %v681 = vpop.permute.xlu0 %680
    %682 = vrot.lane.b32.xlu0 %v607, 112
    %v683 = vpop.permute.xlu0 %682
    %684 = vrot.lane.b32.xlu0 %v633, 112
    %v685 = vpop.permute.xlu0 %684
    %686 = vrot.lane.b32.xlu0 %v608, 112
    %v687 = vpop.permute.xlu0 %686
    %688 = vrot.lane.b32.xlu0 %v634, 112
    %v689 = vpop.permute.xlu0 %688
    %690 = vrot.lane.b32.xlu0 %v609, 112
    %v691 = vpop.permute.xlu0 %690
    %692 = vrot.lane.b32.xlu0 %v635, 112
    %v693 = vpop.permute.xlu0 %692
    %694 = vrot.lane.b32.xlu0 %v610, 112
    %v695 = vpop.permute.xlu0 %694
    %696 = vrot.lane.b32.xlu0 %v636, 112
    %v697 = vpop.permute.xlu0 %696
    %v698 = vsel %vm248, %v667, %v669
    %v699 = vsel %vm248, %v671, %v673
    %v700 = vsel %vm248, %v675, %v677
    %v701 = vsel %vm248, %v679, %v681
    %v702 = vsel %vm248, %v683, %v685
    %v703 = vsel %vm248, %v687, %v689
    %v704 = vsel %vm248, %v691, %v693
    %v705 = vsel %vm248, %v695, %v697
    %714 = vmatprep.subr.bf16.mxu0 0
    %715 = vmatpush1.bf16.msra.mxu0 %v705
    %716 = vmatprep.subr.bf16.mxu0 0
    %717 = vmatpush1.bf16.msra.mxu0 %v704
    %718 = vmatprep.subr.bf16.mxu0 0
    %719 = vmatpush1.bf16.msra.mxu0 %v703
    %720 = vmatprep.subr.bf16.mxu0 0
    %721 = vmatpush1.bf16.msra.mxu0 %v702
    %722 = vmatprep.subr.bf16.mxu0 0
    %723 = vmatpush1.bf16.msra.mxu0 %v701
    %724 = vmatprep.subr.bf16.mxu0 0
    %725 = vmatpush1.bf16.msra.mxu0 %v700
    %726 = vmatprep.subr.bf16.mxu0 0
    %727 = vmatpush1.bf16.msra.mxu0 %v699
    %728 = vmatprep.subr.bf16.mxu0 0
    %729 = vmatpush1.bf16.msra.mxu0 %v698
    %730 = vmatprep.subr.bf16.mxu0 0
    %731 = vmatpush2.bf16.msra.mxu0 0
    %732 = vmatprep.subr.bf16.mxu0 0
    %733 = vmatpush2.bf16.msra.mxu0 0
    %734 = vmatprep.subr.bf16.mxu0 0
    %735 = vmatpush2.bf16.msra.mxu0 0
    %736 = vmatprep.subr.bf16.mxu0 0
    %737 = vmatpush2.bf16.msra.mxu0 0
    %738 = vmatprep.subr.bf16.mxu0 0
    %739 = vmatpush2.bf16.msra.mxu0 0
    %740 = vmatprep.subr.bf16.mxu0 0
    %741 = vmatpush2.bf16.msra.mxu0 0
    %742 = vmatprep.subr.bf16.mxu0 0
    %743 = vmatpush2.bf16.msra.mxu0 0
    %744 = vmatprep.subr.bf16.mxu0 0
    %745 = vmatpush2.bf16.msra.mxu0 0
    %746 = vmatprep.mubr.bf16.mxu0 0
    %747 = vmatmul.mubr.bf16.gmra.mxu0 %v646
    %v748 = vpop.f32.mrf.mxu0
    %v749 = vadd.f32 0.0, %v748
    %v750 = vpop.f32.mrf.mxu0
    %v751 = vpop.f32.mrf.mxu0
    %v752 = vadd.f32 0.0, %v751
    %v753 = vpop.f32.mrf.mxu0
    %754 = vmatprep.mubr.bf16.mxu0 0
    %755 = vmatmul.mubr.bf16.gmra.mxu0 %v647
    %v756 = vpop.f32.mrf.mxu0
    %v757 = vadd.f32 0.0, %v756
    %v758 = vpop.f32.mrf.mxu0
    %v759 = vpop.f32.mrf.mxu0
    %v760 = vpop.f32.mrf.mxu0
    %761 = vdwg.mxu0
    %v765 = vunpack.c.l.b16 %v611
    %v766 = vunpack.c.l.b16 %v612
    %v767 = vunpack.c.l.b16 %v613
    %v768 = vpack.c.b16 %v766, %v765
    %v769 = vpack.c.b16 %v767, %v767
    %772 = vmatprep.subr.bf16.mxu0 0
    %773 = vmatpush1.bf16.msra.mxu0 %v610
    %774 = vmatprep.subr.bf16.mxu0 0
    %775 = vmatpush1.bf16.msra.mxu0 %v609
    %776 = vmatprep.subr.bf16.mxu0 0
    %777 = vmatpush1.bf16.msra.mxu0 %v608
    %778 = vmatprep.subr.bf16.mxu0 0
    %779 = vmatpush1.bf16.msra.mxu0 %v607
    %780 = vmatprep.subr.bf16.mxu0 0
    %781 = vmatpush1.bf16.msra.mxu0 %v606
    %782 = vmatprep.subr.bf16.mxu0 0
    %783 = vmatpush1.bf16.msra.mxu0 %v605
    %784 = vmatprep.subr.bf16.mxu0 0
    %785 = vmatpush1.bf16.msra.mxu0 %v604
    %786 = vmatprep.subr.bf16.mxu0 0
    %787 = vmatpush1.bf16.msra.mxu0 %v603
    %788 = vmatprep.subr.bf16.mxu0 0
    %789 = vmatpush2.bf16.msra.mxu0 0
    %790 = vmatprep.subr.bf16.mxu0 0
    %791 = vmatpush2.bf16.msra.mxu0 0
    %792 = vmatprep.subr.bf16.mxu0 0
    %793 = vmatpush2.bf16.msra.mxu0 0
    %794 = vmatprep.subr.bf16.mxu0 0
    %795 = vmatpush2.bf16.msra.mxu0 0
    %796 = vmatprep.subr.bf16.mxu0 0
    %797 = vmatpush2.bf16.msra.mxu0 0
    %798 = vmatprep.subr.bf16.mxu0 0
    %799 = vmatpush2.bf16.msra.mxu0 0
    %800 = vmatprep.subr.bf16.mxu0 0
    %801 = vmatpush2.bf16.msra.mxu0 0
    %802 = vmatprep.subr.bf16.mxu0 0
    %803 = vmatpush2.bf16.msra.mxu0 0
    %804 = vmatprep.mubr.bf16.mxu0 0
    %805 = vmatmul.mubr.bf16.gmra.mxu0 %v768
    %v806 = vpop.f32.mrf.mxu0
    %v807 = vadd.f32 %v749, %v806
    %v808 = vpop.f32.mrf.mxu0
    %v809 = vpop.f32.mrf.mxu0
    %v810 = vadd.f32 %v752, %v809
    %v811 = vpop.f32.mrf.mxu0
    %812 = vmatprep.mubr.bf16.mxu0 0
    %813 = vmatmul.mubr.bf16.gmra.mxu0 %v769
    %v814 = vpop.f32.mrf.mxu0
    %v815 = vadd.f32 %v757, %v814
    %v816 = vpop.f32.mrf.mxu0
    %v817 = vpop.f32.mrf.mxu0
    %v818 = vpop.f32.mrf.mxu0
    %819 = vdwg.mxu0
    %v820 = vld [vmem:[#allocation5 + $0x8] sm:$0xf]
    %v821 = vld [vmem:[#allocation5 + $0x14] sm:$0xf]
    %v822 = vld [vmem:[#allocation5 + $0x20] sm:$0xf]
    %v826 = vunpack.c.l.b16 %v820
    %v827 = vunpack.c.l.b16 %v821
    %v828 = vunpack.c.l.b16 %v822
    %v829 = vpack.c.b16 %v827, %v826
    %v830 = vpack.c.b16 %v828, %v828
    %833 = vrot.lane.b32.xlu0 %v603, 96
    %v834 = vpop.permute.xlu0 %833
    %835 = vrot.lane.b32.xlu0 %v629, 96
    %v836 = vpop.permute.xlu0 %835
    %837 = vrot.lane.b32.xlu0 %v604, 96
    %v838 = vpop.permute.xlu0 %837
    %839 = vrot.lane.b32.xlu0 %v630, 96
    %v840 = vpop.permute.xlu0 %839
    %841 = vrot.lane.b32.xlu0 %v605, 96
    %v842 = vpop.permute.xlu0 %841
    %843 = vrot.lane.b32.xlu0 %v631, 96
    %v844 = vpop.permute.xlu0 %843
    %845 = vrot.lane.b32.xlu0 %v606, 96
    %v846 = vpop.permute.xlu0 %845
    %847 = vrot.lane.b32.xlu0 %v632, 96
    %v848 = vpop.permute.xlu0 %847
    %849 = vrot.lane.b32.xlu0 %v607, 96
    %v850 = vpop.permute.xlu0 %849
    %851 = vrot.lane.b32.xlu0 %v633, 96
    %v852 = vpop.permute.xlu0 %851
    %853 = vrot.lane.b32.xlu0 %v608, 96
    %v854 = vpop.permute.xlu0 %853
    %855 = vrot.lane.b32.xlu0 %v634, 96
    %v856 = vpop.permute.xlu0 %855
    %857 = vrot.lane.b32.xlu0 %v609, 96
    %v858 = vpop.permute.xlu0 %857
    %859 = vrot.lane.b32.xlu0 %v635, 96
    %v860 = vpop.permute.xlu0 %859
    %861 = vrot.lane.b32.xlu0 %v610, 96
    %v862 = vpop.permute.xlu0 %861
    %863 = vrot.lane.b32.xlu0 %v636, 96
    %v864 = vpop.permute.xlu0 %863
    %v865 = vsel %vm416, %v834, %v836
    %v866 = vsel %vm416, %v838, %v840
    %v867 = vsel %vm416, %v842, %v844
    %v868 = vsel %vm416, %v846, %v848
    %v869 = vsel %vm416, %v850, %v852
    %v870 = vsel %vm416, %v854, %v856
    %v871 = vsel %vm416, %v858, %v860
    %v872 = vsel %vm416, %v862, %v864
    %881 = vmatprep.subr.bf16.mxu0 0
    %882 = vmatpush1.bf16.msra.mxu0 %v872
    %883 = vmatprep.subr.bf16.mxu0 0
    %884 = vmatpush1.bf16.msra.mxu0 %v871
    %885 = vmatprep.subr.bf16.mxu0 0
    %886 = vmatpush1.bf16.msra.mxu0 %v870
    %887 = vmatprep.subr.bf16.mxu0 0
    %888 = vmatpush1.bf16.msra.mxu0 %v869
    %889 = vmatprep.subr.bf16.mxu0 0
    %890 = vmatpush1.bf16.msra.mxu0 %v868
    %891 = vmatprep.subr.bf16.mxu0 0
    %892 = vmatpush1.bf16.msra.mxu0 %v867
    %893 = vmatprep.subr.bf16.mxu0 0
    %894 = vmatpush1.bf16.msra.mxu0 %v866
    %895 = vmatprep.subr.bf16.mxu0 0
    %896 = vmatpush1.bf16.msra.mxu0 %v865
    %897 = vmatprep.subr.bf16.mxu0 0
    %898 = vmatpush2.bf16.msra.mxu0 0
    %899 = vmatprep.subr.bf16.mxu0 0
    %900 = vmatpush2.bf16.msra.mxu0 0
    %901 = vmatprep.subr.bf16.mxu0 0
    %902 = vmatpush2.bf16.msra.mxu0 0
    %903 = vmatprep.subr.bf16.mxu0 0
    %904 = vmatpush2.bf16.msra.mxu0 0
    %905 = vmatprep.subr.bf16.mxu0 0
    %906 = vmatpush2.bf16.msra.mxu0 0
    %907 = vmatprep.subr.bf16.mxu0 0
    %908 = vmatpush2.bf16.msra.mxu0 0
    %909 = vmatprep.subr.bf16.mxu0 0
    %910 = vmatpush2.bf16.msra.mxu0 0
    %911 = vmatprep.subr.bf16.mxu0 0
    %912 = vmatpush2.bf16.msra.mxu0 0
    %913 = vmatprep.mubr.bf16.mxu0 0
    %914 = vmatmul.mubr.bf16.gmra.mxu0 %v829
    %v915 = vpop.f32.mrf.mxu0
    %v916 = vadd.f32 0.0, %v915
    %v917 = vpop.f32.mrf.mxu0
    %v918 = vpop.f32.mrf.mxu0
    %v919 = vadd.f32 0.0, %v918
    %v920 = vpop.f32.mrf.mxu0
    %921 = vmatprep.mubr.bf16.mxu0 0
    %922 = vmatmul.mubr.bf16.gmra.mxu0 %v830
    %v923 = vpop.f32.mrf.mxu0
    %v924 = vadd.f32 0.0, %v923
    %v925 = vpop.f32.mrf.mxu0
    %v926 = vpop.f32.mrf.mxu0
    %v927 = vpop.f32.mrf.mxu0
    %928 = vdwg.mxu0
    %v929 = vadd.f32 %v807, %v916
    %v930 = vadd.f32 %v810, %v919
    %v931 = vadd.f32 %v815, %v924
    %s932 = scalar_lea.vmem [#allocation7], 24
    %933 = vst [vmem:[%s932] sm:$0xff] %v929
    %934 = vst [vmem:[%s932 + $0x8] sm:$0xff] %v930
    %935 = vst [vmem:[%s932 + $0x10] sm:$0xff] %v931
    %936 = vadd.xlane.f32.xlu0 %v929
    %v937 = vpop.xlane.xlu0 %936
    %938 = vadd.xlane.f32.xlu0 %v930
    %v939 = vpop.xlane.xlu0 %938
    %940 = vadd.xlane.f32.xlu0 %v931
    %v941 = vpop.xlane.xlu0 %940
    %v942 = vadd.f32 %v493, %v937
    %v943 = vadd.f32 %v494, %v939
    %v944 = vadd.f32 %v495, %v941
    %v945 = vmul.f32 %v929, %v929
    %v946 = vmul.f32 %v930, %v930
    %v947 = vmul.f32 %v931, %v931
    %948 = vadd.xlane.f32.xlu0 %v945
    %v949 = vpop.xlane.xlu0 %948
    %950 = vadd.xlane.f32.xlu0 %v946
    %v951 = vpop.xlane.xlu0 %950
    %952 = vadd.xlane.f32.xlu0 %v947
    %v953 = vpop.xlane.xlu0 %952
    %v954 = vadd.f32 %v505, %v949
    %v955 = vadd.f32 %v506, %v951
    %v956 = vadd.f32 %v507, %v953
    %vm957 = vcmask 7168
    %958 = vst.msk [vmem:[%s3] sm:$0xff] %vm957, %v942
    %959 = vst.msk [vmem:[%s3 + $0x8] sm:$0xff] %vm957, %v943
    %960 = vst.msk [vmem:[%s3 + $0x10] sm:$0xff] %vm957, %v944
    %961 = vst.msk [vmem:[%s4] sm:$0xff] %vm957, %v954
    %962 = vst.msk [vmem:[%s4 + $0x8] sm:$0xff] %vm957, %v955
    %963 = vst.msk [vmem:[%s4 + $0x10] sm:$0xff] %vm957, %v956
    // Predicated region
    $region18: #{tpu_custom_call.1} parent=1 // pred_check
      _
    $region19: #{tpu_custom_call.1} parent=1 // pred_check_branch
      %965 = sbr.rel (0) target = $region21
    $region20: #{tpu_custom_call.1} parent=1 // pred_region
      %s967 = ssub.s32 768, 768
      %968 = vsyncadd [#allocation4], %s967
      %s969 = sshll.u32 [#allocation7], 4
      %s970 = int_to_ptr.vmem [resolvable:$true] %s969
      %975 = dma.vmem_to_hbm [thread:$0]  %s970, 768, %s2, [#allocation4], 128, 128, 8
    $region21: #{tpu_custom_call.1} parent=1 // pred_fallthru
      _
    // Predicated region
    $region22: #{tpu_custom_call.1} parent=1 // pred_check
      _
    $region23: #{tpu_custom_call.1} parent=1 // pred_check_branch
      %977 = sbr.rel (0) target = $region25
    $region24: #{tpu_custom_call.1} parent=1 // pred_region
      _
    $region25: #{tpu_custom_call.1} parent=1 // pred_fallthru
      _
    // Predicated region
    $region26: #{tpu_custom_call.1} parent=1 // pred_check
      _
    $region27: #{tpu_custom_call.1} parent=1 // pred_check_branch
      %979 = sbr.rel (0) target = $region29
    $region28: #{tpu_custom_call.1} parent=1 // pred_region
      _
    $region29: #{tpu_custom_call.1} parent=1 // pred_fallthru
      _
    // Predicated region
    $region30: #{tpu_custom_call.1} parent=1 // pred_check
      _
    $region31: #{tpu_custom_call.1} parent=1 // pred_check_branch
      %981 = sbr.rel (0) target = $region33
    $region32: #{tpu_custom_call.1} parent=1 // pred_region
      %982 = dma.done [#allocation4], 768
    $region33: #{tpu_custom_call.1} parent=1 // pred_fallthru
      _
    // Predicated region
    $region34: #{tpu_custom_call.1} parent=1 // pred_check
      _
    $region35: #{tpu_custom_call.1} parent=1 // pred_check_branch
      %984 = sbr.rel (0) target = $region37
    $region36: #{tpu_custom_call.1} parent=1 // pred_region
      _
    $region37: #{tpu_custom_call.1} parent=1 // pred_fallthru
      _
    // Predicated region
    $region38: #{tpu_custom_call.1} parent=1 // pred_check
      _
    $region39: #{tpu_custom_call.1} parent=1 // pred_check_branch
      %986 = sbr.rel (0) target = $region41
    $region40: #{tpu_custom_call.1} parent=1 // pred_region
      _
    $region41: #{tpu_custom_call.1} parent=1 // pred_fallthru
      _
    %987 = vsyncpa [#allocation3], 1
    %988 = vsyncpa [#allocation6], 1
    %989 = vsyncpa [#allocation4], 1

</llo_original>
